<compile_context>
chip_gen: v7x
topology: tpu7x:2x2x1
jax: 0.10.0
libtpu: 0.0.40
codegen_flags: <defaults>
</compile_context>

<pallas_src>
import functools

import jax
import jax.numpy as jnp
from jax.experimental import pallas as pl
from jax.experimental.pallas import tpu as pltpu

_LANES = 128


def _dice_kernel(x_ref, t_ref, out_ref, acc_ref, *, use_softmax, masked, hw, ts):
    """One grid step: softmax/sigmoid over channels + vector partial sums.

    x_ref, t_ref : (C, ts, 128) VMEM blocks (one image, one pixel tile)
    out_ref      : (3, 128)     VMEM block  (per-image partial sums)
    acc_ref      : (3, ts, 128) f32 VMEM scratch accumulator
    """
    i = pl.program_id(1)

    @pl.when(i == 0)
    def _():
        acc_ref[...] = jnp.zeros_like(acc_ref)

    x = x_ref[...].astype(jnp.float32)    # (C, ts, 128)
    t = t_ref[...].astype(jnp.float32)    # (C, ts, 128)

    if use_softmax:
        # softmax over the channel axis (axis 0) == F.softmax(inputs, dim=1).
        # Reductions over the leading (non-tiled) axis lower to C-1 elementwise
        # VPU max/add ops on full (ts, 128) planes -- no XLU work per step.
        m = jnp.max(x, axis=0, keepdims=True)
        e = jnp.exp(x - m)
        s = jnp.sum(e, axis=0, keepdims=True)
        p = e * pl.reciprocal(s, approx=True)     # EUP vrcp (idle slot here)
    else:
        # sigmoid branch (inputs.dim() <= 1 or shape[1] == 1)
        p = jax.nn.sigmoid(x)

    if masked:
        # Zero contributions from padded pixels: targets are already 0 there,
        # but softmax/sigmoid of padded logits would still inflate sum(p).
        row = jax.lax.broadcasted_iota(jnp.int32, (ts, _LANES), 0)
        lane = jax.lax.broadcasted_iota(jnp.int32, (ts, _LANES), 1)
        pix = (i * ts + row) * _LANES + lane
        p = p * (pix < hw).astype(jnp.float32)

    # Vector partial sums (VPU only) accumulated in VMEM across pixel tiles.
    acc_ref[0] += jnp.sum(p * t, axis=0)          # intersection partials
    acc_ref[1] += jnp.sum(p, axis=0)              # inputs_flat.sum() partials
    acc_ref[2] += jnp.sum(t, axis=0)              # targets_flat.sum() partials

    # Epilogue, once per image: fold the sublane axis into (3, 128) partials.
    @pl.when(i == pl.num_programs(1) - 1)
    def _():
        out_ref[...] = jnp.sum(acc_ref[...], axis=1)


def dice_loss(inputs, targets, *, smooth=1e-6, ts_max=64):
    """Pallas DiceLoss forward. inputs/targets: (N, C, H, W), NCHW like PyTorch."""
    N, C, H, W = inputs.shape
    HW = H * W
    use_softmax = C > 1           # mirrors `inputs.dim() > 1 and inputs.shape[1] > 1`

    # ---- pick the pixel tile: ts sublanes x 128 lanes per channel ----------
    rows = -(-HW // _LANES)                                   # ceil(HW / 128)

    # VMEM cost: 2 inputs x 2 pipeline buffers x (C * ts * 128 * 4 B) per block.
    # Keep well under the 32 MiB scoped default (and v7x's 64 MiB physical).
    vmem_budget = 8 * 1024 * 1024
    ts_cap = max(8, (vmem_budget // (4 * C * _LANES * 4)) // 8 * 8)
    ts_max = max(8, min(ts_max, ts_cap))

    if rows <= ts_max:
        ts, rows_pad = rows, rows                             # whole image in one tile
    else:
        ts = next((c for c in range(ts_max - ts_max % 8, 7, -8) if rows % c == 0), None)
        if ts is not None:
            rows_pad = rows
        else:
            ts = ts_max - ts_max % 8
            rows_pad = -(-rows // ts) * ts

    pixels_pad = rows_pad * _LANES
    masked = pixels_pad != HW

    # ---- layout: NCHW is contiguous as (N, C, HW); reshapes are free -------
    x = inputs.reshape(N, C, HW)
    t = targets.reshape(N, C, HW)        # keep native dtype; cast in-kernel
    if masked:
        # TODO(synk): padding adds one extra HBM copy; only hit when H*W is not
        # a multiple of the tile width -- the kernel masks the padded pixels.
        x = jnp.pad(x, ((0, 0), (0, 0), (0, pixels_pad - HW)))
        t = jnp.pad(t, ((0, 0), (0, 0), (0, pixels_pad - HW)))
    x = x.reshape(N, C, rows_pad, _LANES)
    t = t.reshape(N, C, rows_pad, _LANES)

    kernel = functools.partial(_dice_kernel, use_softmax=use_softmax,
                               masked=masked, hw=HW, ts=ts)

    partials = pl.pallas_call(
        kernel,
        out_shape=jax.ShapeDtypeStruct((N, 3, _LANES), jnp.float32),
        grid_spec=pltpu.PrefetchScalarGridSpec(
            num_scalar_prefetch=0,
            grid=(N, rows_pad // ts),
            in_specs=[
                pl.BlockSpec((None, C, ts, _LANES), lambda n, i: (n, 0, i, 0)),
                pl.BlockSpec((None, C, ts, _LANES), lambda n, i: (n, 0, i, 0)),
            ],
            out_specs=pl.BlockSpec((None, 3, _LANES), lambda n, i: (n, 0, 0)),
            scratch_shapes=[pltpu.VMEM((3, ts, _LANES), jnp.float32)],
        ),
        compiler_params=pltpu.CompilerParams(
            # images are independent (multi-TensorCore friendly); the pixel-tile
            # axis carries the running accumulator.
            dimension_semantics=("parallel", "arbitrary"),
        ),
    )(x, t)

    # Tiny final reduction + dice formula on the (N, 3, 128) partials.
    inter, sum_p, sum_t = jnp.sum(partials, axis=(0, 2))
    return 1.0 - (2.0 * inter + smooth) / (sum_p + sum_t + smooth)


def _dice_loss_ref(inputs, targets, smooth=1e-6):
    # Pure-JAX reference mirroring the PyTorch module.
    if inputs.ndim > 1 and inputs.shape[1] > 1:
        p = jax.nn.softmax(inputs, axis=1)
    else:
        p = jax.nn.sigmoid(inputs)
    pf = p.reshape(-1)
    tf = targets.reshape(-1).astype(jnp.float32)
    inter = jnp.sum(pf * tf)
    return 1.0 - (2.0 * inter + smooth) / (jnp.sum(pf) + jnp.sum(tf) + smooth)


if __name__ == "__main__":
    key = jax.random.PRNGKey(0)
    k_logits, k_labels = jax.random.split(key)

    N, C, H, W = 2, 4, 16, 16
    logits = jax.random.normal(k_logits, (N, C, H, W), dtype=jnp.float32)
    # one-hot targets, same NCHW shape as typical segmentation usage
    labels = jax.random.randint(k_labels, (N, H, W), 0, C)
    targets = jax.nn.one_hot(labels, C, dtype=jnp.float32)        # (N, H, W, C)
    targets = jnp.transpose(targets, (0, 3, 1, 2))                # (N, C, H, W)

    loss = dice_loss(logits, targets)
    loss = jax.block_until_ready(loss)

    ref = _dice_loss_ref(logits, targets)
    assert jnp.allclose(loss, ref, atol=1e-4, rtol=1e-4), (loss, ref)

    print("KERNEL_OK")
</pallas_src>

<mosaic_0001>
module attributes {stable_mosaic.version = 11 : i64} {
  func.func @_dice_kernel(%arg0: i32, %arg1: i32, %arg2: memref<1x4x2x128xf32, #tpu.memory_space<vmem>>, %arg3: memref<1x4x2x128xf32, #tpu.memory_space<vmem>>, %arg4: memref<1x3x128xf32, #tpu.memory_space<vmem>>, %arg5: memref<3x2x128xf32, #tpu.memory_space<vmem>>) attributes {dimension_semantics = [#tpu.dimension_semantics<parallel>, #tpu.dimension_semantics<arbitrary>], iteration_bounds = array<i64: 2, 1>, scalar_prefetch = 0 : i64, scratch_operands = 1 : i64, tpu.core_type = #tpu.core_type<tc>, window_params = [{transform_indices = @transform_0, window_bounds = array<i64: 1, 4, 2, 128>}, {transform_indices = @transform_1, window_bounds = array<i64: 1, 4, 2, 128>}, {transform_indices = @transform_2, window_bounds = array<i64: 1, 3, 128>}]} {
    %c0_i32 = arith.constant 0 : i32
    %0 = arith.cmpi eq, %arg1, %c0_i32 : i32
    %1 = arith.extui %0 : i1 to i32
    %c0_i32_0 = arith.constant 0 : i32
    %2 = arith.cmpi ne, %1, %c0_i32_0 : i32
    scf.if %2 {
      %cst_30 = arith.constant 0.000000e+00 : f32
      %42 = vector.broadcast %cst_30 : f32 to vector<3x2x128xf32>
      %c0_31 = arith.constant 0 : index
      %c0_32 = arith.constant 0 : index
      %c0_33 = arith.constant 0 : index
      %43 = vector.load %arg5[%c0_31, %c0_32, %c0_33] : memref<3x2x128xf32, #tpu.memory_space<vmem>>, vector<3x2x128xf32>
      tpu.vector_store %arg5[%c0_31, %c0_32, %c0_33], %42 {strides = array<i32>} : memref<3x2x128xf32, #tpu.memory_space<vmem>>, vector<3x2x128xf32>,
    } else {
    }
    %c0 = arith.constant 0 : index
    %c0_1 = arith.constant 0 : index
    %c0_2 = arith.constant 0 : index
    %c0_3 = arith.constant 0 : index
    %3 = vector.load %arg2[%c0, %c0_1, %c0_2, %c0_3] : memref<1x4x2x128xf32, #tpu.memory_space<vmem>>, vector<1x4x2x128xf32>
    %4 = vector.shape_cast %3 : vector<1x4x2x128xf32> to vector<4x2x128xf32>
    %c0_4 = arith.constant 0 : index
    %c0_5 = arith.constant 0 : index
    %c0_6 = arith.constant 0 : index
    %c0_7 = arith.constant 0 : index
    %5 = vector.load %arg3[%c0_4, %c0_5, %c0_6, %c0_7] : memref<1x4x2x128xf32, #tpu.memory_space<vmem>>, vector<1x4x2x128xf32>
    %6 = vector.shape_cast %5 : vector<1x4x2x128xf32> to vector<4x2x128xf32>
    %cst = arith.constant dense<0xFF800000> : vector<2x128xf32>
    %7 = vector.multi_reduction <maximumf>, %4, %cst [0] : vector<4x2x128xf32> to vector<2x128xf32>
    %8 = vector.shape_cast %7 : vector<2x128xf32> to vector<1x2x128xf32>
    %9 = vector.broadcast %8 : vector<1x2x128xf32> to vector<4x2x128xf32>
    %10 = arith.subf %4, %9 : vector<4x2x128xf32>
    %11 = math.exp %10 : vector<4x2x128xf32>
    %cst_8 = arith.constant dense<0.000000e+00> : vector<2x128xf32>
    %12 = vector.multi_reduction <add>, %11, %cst_8 [0] : vector<4x2x128xf32> to vector<2x128xf32>
    %13 = vector.shape_cast %12 : vector<2x128xf32> to vector<1x2x128xf32>
    %14 = tpu.reciprocal %13 {approx = true} : vector<1x2x128xf32> -> vector<1x2x128xf32>
    %15 = vector.broadcast %14 : vector<1x2x128xf32> to vector<4x2x128xf32>
    %16 = arith.mulf %11, %15 : vector<4x2x128xf32>
    %c0_9 = arith.constant 0 : index
    %c0_10 = arith.constant 0 : index
    %c0_11 = arith.constant 0 : index
    %17 = vector.load %arg5[%c0_9, %c0_10, %c0_11] : memref<3x2x128xf32, #tpu.memory_space<vmem>>, vector<1x2x128xf32>
    %18 = vector.shape_cast %17 : vector<1x2x128xf32> to vector<2x128xf32>
    %19 = arith.mulf %16, %6 : vector<4x2x128xf32>
    %cst_12 = arith.constant dense<0.000000e+00> : vector<2x128xf32>
    %20 = vector.multi_reduction <add>, %19, %cst_12 [0] : vector<4x2x128xf32> to vector<2x128xf32>
    %21 = arith.addf %18, %20 : vector<2x128xf32>
    %c0_13 = arith.constant 0 : index
    %c0_14 = arith.constant 0 : index
    %c0_15 = arith.constant 0 : index
    %22 = vector.load %arg5[%c0_13, %c0_14, %c0_15] : memref<3x2x128xf32, #tpu.memory_space<vmem>>, vector<1x2x128xf32>
    %23 = vector.shape_cast %22 : vector<1x2x128xf32> to vector<2x128xf32>
    %24 = vector.shape_cast %21 : vector<2x128xf32> to vector<1x2x128xf32>
    tpu.vector_store %arg5[%c0_13, %c0_14, %c0_15], %24 {strides = array<i32>} : memref<3x2x128xf32, #tpu.memory_space<vmem>>, vector<1x2x128xf32>,
    %c1 = arith.constant 1 : index
    %c0_16 = arith.constant 0 : index
    %c0_17 = arith.constant 0 : index
    %25 = vector.load %arg5[%c1, %c0_16, %c0_17] : memref<3x2x128xf32, #tpu.memory_space<vmem>>, vector<1x2x128xf32>
    %26 = vector.shape_cast %25 : vector<1x2x128xf32> to vector<2x128xf32>
    %cst_18 = arith.constant dense<0.000000e+00> : vector<2x128xf32>
    %27 = vector.multi_reduction <add>, %16, %cst_18 [0] : vector<4x2x128xf32> to vector<2x128xf32>
    %28 = arith.addf %26, %27 : vector<2x128xf32>
    %c1_19 = arith.constant 1 : index
    %c0_20 = arith.constant 0 : index
    %c0_21 = arith.constant 0 : index
    %29 = vector.load %arg5[%c1_19, %c0_20, %c0_21] : memref<3x2x128xf32, #tpu.memory_space<vmem>>, vector<1x2x128xf32>
    %30 = vector.shape_cast %29 : vector<1x2x128xf32> to vector<2x128xf32>
    %31 = vector.shape_cast %28 : vector<2x128xf32> to vector<1x2x128xf32>
    tpu.vector_store %arg5[%c1_19, %c0_20, %c0_21], %31 {strides = array<i32>} : memref<3x2x128xf32, #tpu.memory_space<vmem>>, vector<1x2x128xf32>,
    %c2 = arith.constant 2 : index
    %c0_22 = arith.constant 0 : index
    %c0_23 = arith.constant 0 : index
    %32 = vector.load %arg5[%c2, %c0_22, %c0_23] : memref<3x2x128xf32, #tpu.memory_space<vmem>>, vector<1x2x128xf32>
    %33 = vector.shape_cast %32 : vector<1x2x128xf32> to vector<2x128xf32>
    %cst_24 = arith.constant dense<0.000000e+00> : vector<2x128xf32>
    %34 = vector.multi_reduction <add>, %6, %cst_24 [0] : vector<4x2x128xf32> to vector<2x128xf32>
    %35 = arith.addf %33, %34 : vector<2x128xf32>
    %c2_25 = arith.constant 2 : index
    %c0_26 = arith.constant 0 : index
    %c0_27 = arith.constant 0 : index
    %36 = vector.load %arg5[%c2_25, %c0_26, %c0_27] : memref<3x2x128xf32, #tpu.memory_space<vmem>>, vector<1x2x128xf32>
    %37 = vector.shape_cast %36 : vector<1x2x128xf32> to vector<2x128xf32>
    %38 = vector.shape_cast %35 : vector<2x128xf32> to vector<1x2x128xf32>
    tpu.vector_store %arg5[%c2_25, %c0_26, %c0_27], %38 {strides = array<i32>} : memref<3x2x128xf32, #tpu.memory_space<vmem>>, vector<1x2x128xf32>,
    %c0_i32_28 = arith.constant 0 : i32
    %39 = arith.cmpi eq, %arg1, %c0_i32_28 : i32
    %40 = arith.extui %39 : i1 to i32
    %c0_i32_29 = arith.constant 0 : i32
    %41 = arith.cmpi ne, %40, %c0_i32_29 : i32
    scf.if %41 {
      %c0_30 = arith.constant 0 : index
      %c0_31 = arith.constant 0 : index
      %c0_32 = arith.constant 0 : index
      %42 = vector.load %arg5[%c0_30, %c0_31, %c0_32] : memref<3x2x128xf32, #tpu.memory_space<vmem>>, vector<3x2x128xf32>
      %cst_33 = arith.constant dense<0.000000e+00> : vector<3x128xf32>
      %43 = vector.multi_reduction <add>, %42, %cst_33 [1] : vector<3x2x128xf32> to vector<3x128xf32>
      %c0_34 = arith.constant 0 : index
      %c0_35 = arith.constant 0 : index
      %c0_36 = arith.constant 0 : index
      %44 = vector.load %arg4[%c0_34, %c0_35, %c0_36] : memref<1x3x128xf32, #tpu.memory_space<vmem>>, vector<1x3x128xf32>
      %45 = vector.shape_cast %44 : vector<1x3x128xf32> to vector<3x128xf32>
      %46 = vector.shape_cast %43 : vector<3x128xf32> to vector<1x3x128xf32>
      tpu.vector_store %arg4[%c0_34, %c0_35, %c0_36], %46 {strides = array<i32>} : memref<1x3x128xf32, #tpu.memory_space<vmem>>, vector<1x3x128xf32>,
    } else {
    }
    return
  }
  func.func @transform_0(%arg0: i32, %arg1: i32) -> (i32, i32, i32, i32) {
    %c0_i32 = arith.constant 0 : i32
    %c0_i32_0 = arith.constant 0 : i32
    %c0_i32_1 = arith.constant 0 : i32
    return %arg0, %c0_i32, %arg1, %c0_i32_0 : i32, i32, i32, i32
  }
  func.func @transform_1(%arg0: i32, %arg1: i32) -> (i32, i32, i32, i32) {
    %c0_i32 = arith.constant 0 : i32
    %c0_i32_0 = arith.constant 0 : i32
    %c0_i32_1 = arith.constant 0 : i32
    return %arg0, %c0_i32, %arg1, %c0_i32_0 : i32, i32, i32, i32
  }
  func.func @transform_2(%arg0: i32, %arg1: i32) -> (i32, i32, i32) {
    %c0_i32 = arith.constant 0 : i32
    %c0_i32_0 = arith.constant 0 : i32
    %c0_i32_1 = arith.constant 0 : i32
    return %arg0, %c0_i32, %c0_i32_0 : i32, i32, i32
  }
}

</mosaic_0001>

<llo_original>
// kernel: tpu_custom_call.1
$region0: #{tpu_custom_call.1}
  #allocation0 [shape = 'u32[]', space=smem, size = 0x4, offset = 0x4, fixed_abs, tag = 'smem constant byte address 0x4 - core index']
  #allocation1 [shape = 'u32[144,128]{1,0:T(1,128)}', space=vmem, size = 0x12000, scoped, tag = 'internal scratch']
  #allocation2 [shape = 'f32[3,2,128]{2,1,0:T(2,128)}', space=vmem, size = 0xc00, scoped, tag = 'scratch operand']
  %s0 = inlined_call_operand.hbm [shape: f32[2,4,2,128], index: 0, kind: input, shape index: {}]
  %s1 = inlined_call_operand.hbm [shape: f32[2,4,2,128], index: 1, kind: input, shape index: {}]
  %s2 = inlined_call_operand.vmem [shape: f32[2,3,128], index: 2, kind: output, shape index: {}]
  %s3 = sld [smem:[#allocation0]]
  $region57: #{tpu_custom_call.1} parent=0
    _
  %s5 = ssub.s32 1, %s3
  %s6 = scalar_select 0, %s5, %s3
  $region1: #{tpu_custom_call.1} parent=0
    #allocation3 [shape = 'u8[8192]{0}', space=vmem, size = 0x2000, scoped, tag = 'input window, operand 0']
    #allocation4 [shape = 's32[2]{0}', space=sflag, size = 0x8, scoped, tag = 'scoped memory for tpu_custom_call.1']
    #allocation5 [shape = 'u8[8192]{0}', space=vmem, size = 0x2000, scoped, tag = 'input window, operand 1']
    #allocation6 [shape = 's32[2]{0}', space=sflag, size = 0x8, scoped, tag = 'scoped memory for tpu_custom_call.1']
    %7 = vsyncpa [#allocation4], 0
    %s8 = scalar_lea.sflag [#allocation4], 1
    %9 = vsyncpa %s8, 0
    %10 = vsyncpa [#allocation6], 0
    %s11 = scalar_lea.sflag [#allocation6], 1
    %12 = vsyncpa %s11, 0
    loop: start=0, step=1, limit=4
    $region2: #{tpu_custom_call.1} parent=1 // loop_pre_header
      _
    $region3: #{tpu_custom_call.1} parent=1 // loop_header
      %s14 = sphi 0, %s18
      %p15 = scmp.ge.s32.totalorder %s14, 4
      %s21 = sphi 0, %s33
      %s22 = sphi 0, %s29
      %s23 = sphi 0, %s21
      %s24 = sphi 0, %s22
      %s25 = sphi 0, %s23
      %s26 = sphi 0, %s24
      %s38 = sphi 0, %s40
      %s41 = sphi 0, %s38
      %s42 = sphi 0, %s41
      %s58 = sphi 0, %s42
      %s66 = sphi 0, %s68
      %s69 = sphi 0, %s66
      %s70 = sphi 0, %s69
      %s86 = sphi 0, %s70
      %s92 = sphi 0, %s94
      %s95 = sphi 0, %s92
      %s96 = sphi 0, %s95
      %s112 = sphi 0, %s96
    $region4: #{tpu_custom_call.1} parent=1 // loop_header_branch
      %17 = sbr.rel (%p15) target = $region8
    $region5: #{tpu_custom_call.1} parent=1 // loop_body
      %s19 = ssub.s32 %s14, 1
      %s20 = ssub.s32 %s14, 2
      %s27 = sadd.s32 1, %s22
      %p28 = scmp.ge.s32.totalorder %s27, 1
      %s29 = scalar_select %p28, 0, %s27
      %s30 = sadd.s32 1, %s21
      %s31 = scalar_select %p28, %s30, %s21
      %p32 = scmp.ge.s32.totalorder %s31, 2
      %s33 = scalar_select %p32, 0, %s31
      %s34 = ssub.s32 %s21, %s33
      %s35 = ssub.s32 %s22, %s29
      %s36 = sor.u32 %s34, %s35
      %p37 = scmp.eq.s32.totalorder %s36, 0
      %s39 = sadd.s32 %s38, 1
      %s40 = scalar_select %p37, %s38, %s39
      %p43 = pneg %p37
      %p44 = scmp.eq.s32.totalorder %s14, 1
      %p45 = por %p43, %p44
      %p46 = scmp.ne.s32.totalorder %s38, %s41
      %p47 = scmp.eq.s32.totalorder %s14, 0
      %p48 = por %p46, %p47
      %p49 = scmp.ne.s32.totalorder %s38, %s41
      %p50 = scmp.eq.s32.totalorder %s19, 1
      %p51 = por %p49, %p50
      %p52 = scmp.ne.s32.totalorder %s41, %s42
      %p53 = scmp.eq.s32.totalorder %s19, 0
      %p54 = por %p52, %p53
      %p55 = scmp.ne.s32.totalorder %s41, %s42
      %p56 = scmp.eq.s32.totalorder %s20, 1
      %p57 = por %p55, %p56
      %p59 = scmp.ne.s32.totalorder %s42, %s58
      %p60 = scmp.eq.s32.totalorder %s20, 0
      %p61 = por %p59, %p60
      %s62 = ssub.s32 %s21, %s33
      %s63 = ssub.s32 %s22, %s29
      %s64 = sor.u32 %s62, %s63
      %p65 = scmp.eq.s32.totalorder %s64, 0
      %s67 = sadd.s32 %s66, 1
      %s68 = scalar_select %p65, %s66, %s67
      %p71 = pneg %p65
      %p72 = scmp.eq.s32.totalorder %s14, 1
      %p73 = por %p71, %p72
      %p74 = scmp.ne.s32.totalorder %s66, %s69
      %p75 = scmp.eq.s32.totalorder %s14, 0
      %p76 = por %p74, %p75
      %p77 = scmp.ne.s32.totalorder %s66, %s69
      %p78 = scmp.eq.s32.totalorder %s19, 1
      %p79 = por %p77, %p78
      %p80 = scmp.ne.s32.totalorder %s69, %s70
      %p81 = scmp.eq.s32.totalorder %s19, 0
      %p82 = por %p80, %p81
      %p83 = scmp.ne.s32.totalorder %s69, %s70
      %p84 = scmp.eq.s32.totalorder %s20, 1
      %p85 = por %p83, %p84
      %p87 = scmp.ne.s32.totalorder %s70, %s86
      %p88 = scmp.eq.s32.totalorder %s20, 0
      %p89 = por %p87, %p88
      %s90 = ssub.s32 %s21, %s33
      %p91 = scmp.eq.s32.totalorder %s90, 0
      %s93 = sadd.s32 %s92, 1
      %s94 = scalar_select %p91, %s92, %s93
      %p97 = pneg %p91
      %p98 = scmp.eq.s32.totalorder %s14, 1
      %p99 = por %p97, %p98
      %p100 = scmp.ne.s32.totalorder %s92, %s95
      %p101 = scmp.eq.s32.totalorder %s14, 0
      %p102 = por %p100, %p101
      %p103 = scmp.ne.s32.totalorder %s92, %s95
      %p104 = scmp.eq.s32.totalorder %s19, 1
      %p105 = por %p103, %p104
      %p106 = scmp.ne.s32.totalorder %s95, %s96
      %p107 = scmp.eq.s32.totalorder %s19, 0
      %p108 = por %p106, %p107
      %p109 = scmp.ne.s32.totalorder %s95, %s96
      %p110 = scmp.eq.s32.totalorder %s20, 1
      %p111 = por %p109, %p110
      %p113 = scmp.ne.s32.totalorder %s96, %s112
      %p114 = scmp.eq.s32.totalorder %s20, 0
      %p115 = por %p113, %p114
      %p116 = scmp.le.s32.totalorder 1, %s14
      %p117 = scmp.lt.s32.totalorder %s14, 3
      %p118 = pnand %p116, %p117
      %p119 = pneg %p118
      // Predicated region
      $region9: #{tpu_custom_call.1} parent=5 // pred_check
        _
      $region10: #{tpu_custom_call.1} parent=5 // pred_check_branch
        %121 = sbr.rel (%p118) target = $region12
      $region11: #{tpu_custom_call.1} parent=5 // pred_region
        %s122 = ssub.s32 %s14, 1
      $region12: #{tpu_custom_call.1} parent=5 // pred_fallthru
        _
      %p123 = scmp.lt.s32.totalorder %s14, 2
      // Predicated region
      $region13: #{tpu_custom_call.1} parent=5 // pred_check
        %p124 = pneg %p123
      $region14: #{tpu_custom_call.1} parent=5 // pred_check_branch
        %126 = sbr.rel (%p124) target = $region16
      $region15: #{tpu_custom_call.1} parent=5 // pred_region
        // Predicated region
        $region17: #{tpu_custom_call.1} parent=15 // pred_check
          %p127 = pneg %p48
        $region18: #{tpu_custom_call.1} parent=15 // pred_check_branch
          %129 = sbr.rel (%p127) target = $region20
        $region19: #{tpu_custom_call.1} parent=15 // pred_region
          %s130 = sand.u32 %s38, 1
          %s131 = scalar_lea.sflag [#allocation4], %s130
          %s132 = sand.u32 %s38, 1
          %s133 = smul.addr %s132, 8
          %s134 = scalar_lea.vmem [#allocation3], %s133
          %s136 = ssub.s32 128, 128
          %137 = vsyncadd %s131, %s136
          %s138 = smul.addr %s21, 4
          %s139 = sadd.s32 %s22, %s138
          %s140 = smul.addr %s139, 32
          %s141 = scalar_lea.hbm %s0, %s140
          %s142 = sshll.u32 %s134, 4
          %s143 = int_to_ptr.vmem [resolvable:$true] %s142
          %148 = dma.hbm_to_vmem [thread:$0]  %s141, 128, %s143, %s131, 32, 32, 2
        $region20: #{tpu_custom_call.1} parent=15 // pred_fallthru
          _
        // Predicated region
        $region21: #{tpu_custom_call.1} parent=15 // pred_check
          %p149 = pneg %p76
        $region22: #{tpu_custom_call.1} parent=15 // pred_check_branch
          %151 = sbr.rel (%p149) target = $region24
        $region23: #{tpu_custom_call.1} parent=15 // pred_region
          %s152 = sand.u32 %s66, 1
          %s153 = scalar_lea.sflag [#allocation6], %s152
          %s154 = sand.u32 %s66, 1
          %s155 = smul.addr %s154, 8
          %s156 = scalar_lea.vmem [#allocation5], %s155
          %s158 = ssub.s32 128, 128
          %159 = vsyncadd %s153, %s158
          %s160 = smul.addr %s21, 4
          %s161 = sadd.s32 %s22, %s160
          %s162 = smul.addr %s161, 32
          %s163 = scalar_lea.hbm %s1, %s162
          %s164 = sshll.u32 %s156, 4
          %s165 = int_to_ptr.vmem [resolvable:$true] %s164
          %170 = dma.hbm_to_vmem [thread:$0]  %s163, 128, %s165, %s153, 32, 32, 2
        $region24: #{tpu_custom_call.1} parent=15 // pred_fallthru
          _
      $region16: #{tpu_custom_call.1} parent=5 // pred_fallthru
        _
      %p171 = scmp.le.s32.totalorder 1, %s14
      %p172 = scmp.lt.s32.totalorder %s14, 3
      %p173 = pnand %p171, %p172
      %p174 = pneg %p173
      // Predicated region
      $region25: #{tpu_custom_call.1} parent=5 // pred_check
        _
      $region26: #{tpu_custom_call.1} parent=5 // pred_check_branch
        %176 = sbr.rel (%p173) target = $region28
      $region27: #{tpu_custom_call.1} parent=5 // pred_region
        %s177 = ssub.s32 %s14, 1
        %s178 = sand.u32 %s41, 1
        %s179 = scalar_lea.sflag [#allocation4], %s178
        %s180 = sand.u32 %s41, 1
        %s181 = smul.addr %s180, 8
        %s182 = scalar_lea.vmem [#allocation3], %s181
        // Predicated region
        $region29: #{tpu_custom_call.1} parent=27 // pred_check
          %p183 = pneg %p54
        $region30: #{tpu_custom_call.1} parent=27 // pred_check_branch
          %185 = sbr.rel (%p183) target = $region32
        $region31: #{tpu_custom_call.1} parent=27 // pred_region
          %186 = dma.done %s179, 128
        $region32: #{tpu_custom_call.1} parent=27 // pred_fallthru
          _
        %s187 = sand.u32 %s69, 1
        %s188 = scalar_lea.sflag [#allocation6], %s187
        %s189 = sand.u32 %s69, 1
        %s190 = smul.addr %s189, 8
        %s191 = scalar_lea.vmem [#allocation5], %s190
        // Predicated region
        $region33: #{tpu_custom_call.1} parent=27 // pred_check
          %p192 = pneg %p82
        $region34: #{tpu_custom_call.1} parent=27 // pred_check_branch
          %194 = sbr.rel (%p192) target = $region36
        $region35: #{tpu_custom_call.1} parent=27 // pred_region
          %195 = dma.done %s188, 128
        $region36: #{tpu_custom_call.1} parent=27 // pred_fallthru
          _
        %s196 = sand.u32 %s41, 1
        %s197 = scalar_lea.sflag [#allocation4], %s196
        %s198 = sand.u32 %s41, 1
        %s199 = smul.addr %s198, 8
        %s200 = scalar_lea.vmem [#allocation3], %s199
        %p201 = pneg %p54
        %p202 = pneg %p51
        %s203 = sand.u32 %s69, 1
        %s204 = scalar_lea.sflag [#allocation6], %s203
        %s205 = sand.u32 %s69, 1
        %s206 = smul.addr %s205, 8
        %s207 = scalar_lea.vmem [#allocation5], %s206
        %p208 = pneg %p82
        %p209 = pneg %p79
        %p210 = pneg %p108
        %p211 = pneg %p105
        %p212 = scmp.lt.s32.totalorder %s23, 1
        %s213 = scalar_select %p212, %s23, 1
        %s214 = smul.addr %s213, 4
        %s215 = scalar_lea.vmem %s2, %s214
        %p216 = scmp.lt.s32.totalorder %s23, 1
        %s217 = scalar_select %p216, %s23, 1
        %s218 = smul.addr %s217, 4
        %s219 = scalar_lea.vmem %s2, %s218
        %p220 = scmp.eq.s32.totalorder %s24, 0
        // Predicated region
        $region37: #{tpu_custom_call.1} parent=27 // pred_check
          %p221 = pneg %p220
        $region38: #{tpu_custom_call.1} parent=27 // pred_check_branch
          %223 = sbr.rel (%p221) target = $region40
        $region39: #{tpu_custom_call.1} parent=27 // pred_region
          %224 = vst [vmem:[#allocation2] sm:$0x3] 0.0
          %225 = vst [vmem:[#allocation2 + $0x2] sm:$0x3] 0.0
          %226 = vst [vmem:[#allocation2 + $0x4] sm:$0x3] 0.0
        $region40: #{tpu_custom_call.1} parent=27 // pred_fallthru
          _
        %v227 = vld [vmem:[%s182] sm:$0x3]
        %v228 = vld [vmem:[%s182 + $0x2] sm:$0x3]
        %v229 = vld [vmem:[%s182 + $0x4] sm:$0x3]
        %v230 = vld [vmem:[%s182 + $0x6] sm:$0x3]
        %v231 = vld [vmem:[%s191] sm:$0x3]
        %v232 = vld [vmem:[%s191 + $0x2] sm:$0x3]
        %v233 = vld [vmem:[%s191 + $0x4] sm:$0x3]
        %v234 = vld [vmem:[%s191 + $0x6] sm:$0x3]
        %vm235 = vcmask 1041408
        %v236 = vsel %vm235, %v227, -inf
        %v237 = vsel %vm235, %v228, -inf
        %v238 = vsel %vm235, %v229, -inf
        %v239 = vsel %vm235, %v230, -inf
        %v240 = vmax.f32 %v236, %v237
        %v241 = vmax.f32 %v238, %v239
        %v242 = vmax.f32 %v240, %v241
        %v243 = vsub.f32 %v227, %v242
        %v244 = vsub.f32 %v228, %v242
        %v245 = vsub.f32 %v229, %v242
        %v246 = vsub.f32 %v230, %v242
        %v247 = vmul.f32 %v243, 1.442695
        %v248 = vpow.pop %v247
        %v249 = vmul.f32 %v244, 1.442695
        %v250 = vpow.pop %v249
        %v251 = vmul.f32 %v245, 1.442695
        %v252 = vpow.pop %v251
        %v253 = vmul.f32 %v246, 1.442695
        %v254 = vpow.pop %v253
        %v255 = vsel %vm235, %v248, 0.0
        %v256 = vsel %vm235, %v250, 0.0
        %v257 = vadd.f32 %v255, %v256
        %v258 = vsel %vm235, %v252, 0.0
        %v259 = vadd.f32 %v257, %v258
        %v260 = vsel %vm235, %v254, 0.0
        %v261 = vadd.f32 %v259, %v260
        %v262 = vrcp.pop %v261
        %v263 = vmul.f32 %v248, %v262
        %v264 = vmul.f32 %v250, %v262
        %v265 = vmul.f32 %v252, %v262
        %v266 = vmul.f32 %v254, %v262
        %v267 = vld [vmem:[#allocation2] sm:$0x3]
        %v268 = vmul.f32 %v263, %v231
        %v269 = vmul.f32 %v264, %v232
        %v270 = vmul.f32 %v265, %v233
        %v271 = vmul.f32 %v266, %v234
        %v272 = vsel %vm235, %v268, 0.0
        %v273 = vsel %vm235, %v269, 0.0
        %v274 = vadd.f32 %v272, %v273
        %v275 = vsel %vm235, %v270, 0.0
        %v276 = vadd.f32 %v274, %v275
        %v277 = vsel %vm235, %v271, 0.0
        %v278 = vadd.f32 %v276, %v277
        %v279 = vadd.f32 %v267, %v278
        %280 = vst [vmem:[#allocation2] sm:$0x3] %v279
        %s281 = scalar_lea.vmem [#allocation2], 2
        %v282 = vld [vmem:[%s281] sm:$0x3]
        %v283 = vsel %vm235, %v263, 0.0
        %v284 = vsel %vm235, %v264, 0.0
        %v285 = vadd.f32 %v283, %v284
        %v286 = vsel %vm235, %v265, 0.0
        %v287 = vadd.f32 %v285, %v286
        %v288 = vsel %vm235, %v266, 0.0
        %v289 = vadd.f32 %v287, %v288
        %v290 = vadd.f32 %v282, %v289
        %291 = vst [vmem:[%s281] sm:$0x3] %v290
        %s292 = scalar_lea.vmem [#allocation2], 4
        %v293 = vld [vmem:[%s292] sm:$0x3]
        %v294 = vsel %vm235, %v231, 0.0
        %v295 = vsel %vm235, %v232, 0.0
        %v296 = vadd.f32 %v294, %v295
        %v297 = vsel %vm235, %v233, 0.0
        %v298 = vadd.f32 %v296, %v297
        %v299 = vsel %vm235, %v234, 0.0
        %v300 = vadd.f32 %v298, %v299
        %v301 = vadd.f32 %v293, %v300
        %302 = vst [vmem:[%s292] sm:$0x3] %v301
        // Predicated region
        $region41: #{tpu_custom_call.1} parent=27 // pred_check
          %p303 = pneg %p220
        $region42: #{tpu_custom_call.1} parent=27 // pred_check_branch
          %305 = sbr.rel (%p303) target = $region44
        $region43: #{tpu_custom_call.1} parent=27 // pred_region
          %v306 = vld [vmem:[#allocation2] sm:$0x3]
          %v307 = vld [vmem:[#allocation2 + $0x2] sm:$0x3]
          %v308 = vld [vmem:[#allocation2 + $0x4] sm:$0x3]
          %v309 = vsel %vm235, %v306, 0.0
          %v310 = vrot.slane %v309, 4
          %v311 = vadd.f32 %v309, %v310
          %v312 = vrot.slane %v311, 2
          %v313 = vadd.f32 %v311, %v312
          %v314 = vrot.slane %v313, 1
          %v315 = vadd.f32 %v313, %v314
          %v316 = vsel %vm235, %v307, 0.0
          %v317 = vrot.slane %v316, 4
          %v318 = vadd.f32 %v316, %v317
          %v319 = vrot.slane %v318, 2
          %v320 = vadd.f32 %v318, %v319
          %v321 = vrot.slane %v320, 1
          %v322 = vadd.f32 %v320, %v321
          %v323 = vsel %vm235, %v308, 0.0
          %v324 = vrot.slane %v323, 4
          %v325 = vadd.f32 %v323, %v324
          %v326 = vrot.slane %v325, 2
          %v327 = vadd.f32 %v325, %v326
          %v328 = vrot.slane %v327, 1
          %v329 = vadd.f32 %v327, %v328
          %vm333 = vcmask 1041409
          %v334 = vsel %vm333, %v322, %v315
          %vm335 = vcmask 1042434
          %v336 = vsel %vm335, %v329, %v334
          %338 = vst [vmem:[%s219] sm:$0x7] %v336
        $region44: #{tpu_custom_call.1} parent=27 // pred_fallthru
          _
        %p339 = scmp.lt.s32.totalorder %s23, 1
        %s340 = scalar_select %p339, %s23, 1
        %s341 = smul.addr %s340, 4
        %s342 = scalar_lea.vmem %s2, %s341
        // Predicated region
        $region45: #{tpu_custom_call.1} parent=27 // pred_check
          %p343 = pneg %p105
        $region46: #{tpu_custom_call.1} parent=27 // pred_check_branch
          %345 = sbr.rel (%p343) target = $region48
        $region47: #{tpu_custom_call.1} parent=27 // pred_region
          _
        $region48: #{tpu_custom_call.1} parent=27 // pred_fallthru
          _
      $region28: #{tpu_custom_call.1} parent=5 // pred_fallthru
        _
      %p346 = scmp.le.s32.totalorder 2, %s14
      // Predicated region
      $region49: #{tpu_custom_call.1} parent=5 // pred_check
        %p347 = pneg %p346
      $region50: #{tpu_custom_call.1} parent=5 // pred_check_branch
        %349 = sbr.rel (%p347) target = $region52
      $region51: #{tpu_custom_call.1} parent=5 // pred_region
        %s350 = ssub.s32 %s14, 2
        // Predicated region
        $region53: #{tpu_custom_call.1} parent=51 // pred_check
          %p351 = pneg %p111
        $region54: #{tpu_custom_call.1} parent=51 // pred_check_branch
          %353 = sbr.rel (%p351) target = $region56
        $region55: #{tpu_custom_call.1} parent=51 // pred_region
          %p354 = scmp.lt.s32.totalorder %s25, 1
          %s355 = scalar_select %p354, %s25, 1
          %s356 = smul.addr %s355, 4
          %s357 = scalar_lea.vmem %s2, %s356
        $region56: #{tpu_custom_call.1} parent=51 // pred_fallthru
          _
      $region52: #{tpu_custom_call.1} parent=5 // pred_fallthru
        _
    $region6: #{tpu_custom_call.1} parent=1 // loop_footer
      %s18 = sadd.s32 1, %s14
    $region7: #{tpu_custom_call.1} parent=1 // loop_footer_branch
      %13 = sbr.rel target = $region3
    $region8: #{tpu_custom_call.1} parent=1 // loop_exit
      _
    %358 = vsyncpa [#allocation4], 1
    %s359 = scalar_lea.sflag [#allocation4], 1
    %360 = vsyncpa %s359, 1
    %361 = vsyncpa [#allocation6], 1
    %s362 = scalar_lea.sflag [#allocation6], 1
    %363 = vsyncpa %s362, 1

</llo_original>
